<compile_context>
chip_gen: v7x
topology: tpu7x:2x2x1
jax: 0.10.0
libtpu: 0.0.40
codegen_flags: <defaults>
</compile_context>

<pallas_src>
import math

import jax
import jax.numpy as jnp
from jax.experimental import pallas as pl
from jax.experimental.pallas import tpu as pltpu


def _round_up(n, m):
    return ((n + m - 1) // m) * m


def _pick_block_rows(length, d_model):
    """Rows per block: multiple of 8, ~2^18 f32 elements per block, capped at 4096."""
    target = (1 << 18) // max(d_model, 1)
    lt = min(max(target, 8), 4096, _round_up(length, 8))
    return max(8, (lt // 8) * 8)


def _tspe_kernel(arc2_ref, wf_ref, iv_ref, out_ref):
    # arc2_ref: (Lt, D)     l*div_term[k] (+ pi/2 on the cos half); batch-invariant
    # wf_ref  : (1, D)      Linear(1, H) weight tiled over both halves: [w, w]
    # iv_ref  : (1, Lt, 1)  time-delta column for (L-tile, batch) -- sublane-major
    # out_ref : (1, Lt, D)
    phi = iv_ref[0] * wf_ref[...]                      # (Lt,1)*(1,D) -> (Lt,D), VPU only
    out_ref[0] = jnp.sin(arc2_ref[...] + phi).astype(out_ref.dtype)


def time_shifted_positional_encoding(x, interval, w, div_term, *,
                                     block_rows=None, out_dtype=jnp.float32):
    """x, interval: [B, L] float; w, div_term: [d_model // 2] float -> [B, L, d_model]."""
    length = x.shape[1] if x.ndim > 1 else x.shape[0]   # mirrors the torch forward
    B = interval.shape[0]
    H = div_term.shape[0]
    D = 2 * H
    assert w.shape[-1] == H and interval.shape[-1] == length

    if block_rows is None:
        Lt = _pick_block_rows(length, D)
    else:
        Lt = max(8, _round_up(block_rows, 8))
    Lpad = _round_up(length, Lt)
    n_lt = Lpad // Lt

    # --- batch-invariant tables (in a real model these would be built once at
    # module init, exactly like torch's registered position/div_term buffers). ---
    pos = jnp.arange(Lpad, dtype=jnp.float32)[:, None]                       # [Lpad, 1]
    arc = pos * div_term.astype(jnp.float32)[None, :]                        # [Lpad, H]
    arc2 = jnp.concatenate([arc, arc + jnp.float32(0.5 * math.pi)], axis=-1)  # [Lpad, D]
    wf = jnp.concatenate([w, w]).reshape(1, D).astype(jnp.float32)           # [1, D]

    iv = interval.astype(jnp.float32)
    if Lpad != length:
        iv = jnp.pad(iv, ((0, 0), (0, Lpad - length)))
    iv = iv[..., None]                                                       # [B, Lpad, 1]

    out = pl.pallas_call(
        _tspe_kernel,
        out_shape=jax.ShapeDtypeStruct((B, Lpad, D), out_dtype),
        grid_spec=pltpu.PrefetchScalarGridSpec(
            num_scalar_prefetch=0,
            # L-tiles outer, batch inner: arc2's block index is constant across the
            # inner batch loop, so each arc2 tile is fetched once and reused for all B.
            grid=(n_lt, B),
            in_specs=[
                pl.BlockSpec((Lt, D), lambda lt, b: (lt, 0)),        # arc2 (shared over B)
                pl.BlockSpec((1, D), lambda lt, b: (0, 0)),          # [w, w] (shared)
                pl.BlockSpec((1, Lt, 1), lambda lt, b: (b, lt, 0)),  # interval column
            ],
            out_specs=pl.BlockSpec((1, Lt, D), lambda lt, b: (b, lt, 0)),
        ),
        compiler_params=pltpu.CompilerParams(
            dimension_semantics=("parallel", "parallel"),
            # A few MiB of double-buffered blocks; 32 MiB leaves headroom on every
            # generation including v7x (64 MiB physical VMEM).
            vmem_limit_bytes=32 * 1024 * 1024,
        ),
    )(arc2, wf, iv)

    if Lpad != length:
        out = out[:, :length, :]
    return out


def _reference(x, interval, w, div_term):
    # Plain-JAX mirror of the torch forward for validation.
    length = x.shape[1] if x.ndim > 1 else x.shape[0]
    phi = interval[..., None] * w[None, None, :]                        # [B, L, H]
    pos = jnp.arange(length, dtype=jnp.float32)[:, None]                # [L, 1]
    arc = (pos * div_term[None, :])[None, ...]                          # [1, L, H]
    return jnp.concatenate([jnp.sin(arc + phi), jnp.cos(arc + phi)], axis=-1)


if __name__ == "__main__":
    key = jax.random.PRNGKey(0)
    k_x, k_iv, k_w, k_x2, k_iv2, k_w2 = jax.random.split(key, 6)

    # ---- test 1: small shapes implied by the module (batch=2, seq=8, d_model=32) ----
    B, L, d_model = 2, 8, 32
    H = d_model // 2
    x = jax.random.uniform(k_x, (B, L), dtype=jnp.float32) * 10.0            # time_seq
    interval = jax.random.uniform(k_iv, (B, L), dtype=jnp.float32)           # time_delta_seq
    w = jax.random.uniform(k_w, (H,), dtype=jnp.float32, minval=-1.0, maxval=1.0)
    div_term = jnp.exp(jnp.arange(0, d_model, 2, dtype=jnp.float32)
                       * -(math.log(10000.0) / d_model))

    pe = jax.block_until_ready(time_shifted_positional_encoding(x, interval, w, div_term))
    ref = _reference(x, interval, w, div_term)
    assert pe.shape == (B, L, d_model)
    assert jnp.allclose(pe, ref, atol=1e-5, rtol=1e-5), "mismatch vs reference (test 1)"

    # ---- test 2: exercises row tiling, L padding, and a 16-step parallel grid ----
    B2, L2, d2 = 4, 50, 64
    H2 = d2 // 2
    x2 = jax.random.uniform(k_x2, (B2, L2), dtype=jnp.float32) * 10.0
    iv2 = jax.random.uniform(k_iv2, (B2, L2), dtype=jnp.float32)
    w2 = jax.random.uniform(k_w2, (H2,), dtype=jnp.float32, minval=-1.0, maxval=1.0)
    div2 = jnp.exp(jnp.arange(0, d2, 2, dtype=jnp.float32) * -(math.log(10000.0) / d2))

    pe2 = jax.block_until_ready(
        time_shifted_positional_encoding(x2, iv2, w2, div2, block_rows=16))
    ref2 = _reference(x2, iv2, w2, div2)
    assert pe2.shape == (B2, L2, d2)
    # cos is evaluated as sin(angle + pi/2); at positions ~50 the extra f32 rounding
    # of the (folded) angle is O(1e-5), hence the slightly looser tolerance here.
    assert jnp.allclose(pe2, ref2, atol=2e-4, rtol=2e-4), "mismatch vs reference (test 2)"

    print("KERNEL_OK")
</pallas_src>

<mosaic_0001>
module attributes {stable_mosaic.version = 11 : i64} {
  func.func @_tspe_kernel(%arg0: i32, %arg1: i32, %arg2: memref<8x32xf32, #tpu.memory_space<vmem>>, %arg3: memref<1x32xf32, #tpu.memory_space<vmem>>, %arg4: memref<1x8x1xf32, #tpu.memory_space<vmem>>, %arg5: memref<1x8x32xf32, #tpu.memory_space<vmem>>) attributes {dimension_semantics = [#tpu.dimension_semantics<parallel>, #tpu.dimension_semantics<parallel>], iteration_bounds = array<i64: 1, 2>, scalar_prefetch = 0 : i64, scratch_operands = 0 : i64, tpu.core_type = #tpu.core_type<tc>, window_params = [{transform_indices = @transform_0, window_bounds = array<i64: 8, 32>}, {pipeline_mode = #tpu.pipeline_mode<synchronous>, transform_indices = @transform_1, window_bounds = array<i64: 1, 32>}, {transform_indices = @transform_2, window_bounds = array<i64: 1, 8, 1>}, {transform_indices = @transform_3, window_bounds = array<i64: 1, 8, 32>}]} {
    %c0 = arith.constant 0 : index
    %c0_0 = arith.constant 0 : index
    %c0_1 = arith.constant 0 : index
    %0 = vector.load %arg4[%c0, %c0_0, %c0_1] : memref<1x8x1xf32, #tpu.memory_space<vmem>>, vector<1x8x1xf32>
    %1 = vector.shape_cast %0 : vector<1x8x1xf32> to vector<8x1xf32>
    %c0_2 = arith.constant 0 : index
    %c0_3 = arith.constant 0 : index
    %2 = vector.load %arg3[%c0_2, %c0_3] : memref<1x32xf32, #tpu.memory_space<vmem>>, vector<1x32xf32>
    %3 = vector.broadcast %1 : vector<8x1xf32> to vector<8x32xf32>
    %4 = vector.broadcast %2 : vector<1x32xf32> to vector<8x32xf32>
    %5 = arith.mulf %3, %4 : vector<8x32xf32>
    %c0_4 = arith.constant 0 : index
    %c0_5 = arith.constant 0 : index
    %6 = vector.load %arg2[%c0_4, %c0_5] : memref<8x32xf32, #tpu.memory_space<vmem>>, vector<8x32xf32>
    %7 = arith.addf %6, %5 : vector<8x32xf32>
    %8 = math.sin %7 : vector<8x32xf32>
    %c0_6 = arith.constant 0 : index
    %c0_7 = arith.constant 0 : index
    %c0_8 = arith.constant 0 : index
    %9 = vector.load %arg5[%c0_6, %c0_7, %c0_8] : memref<1x8x32xf32, #tpu.memory_space<vmem>>, vector<1x8x32xf32>
    %10 = vector.shape_cast %9 : vector<1x8x32xf32> to vector<8x32xf32>
    %11 = vector.shape_cast %8 : vector<8x32xf32> to vector<1x8x32xf32>
    tpu.vector_store %arg5[%c0_6, %c0_7, %c0_8], %11 {strides = array<i32>} : memref<1x8x32xf32, #tpu.memory_space<vmem>>, vector<1x8x32xf32>,
    return
  }
  func.func @transform_0(%arg0: i32, %arg1: i32) -> (i32, i32) {
    %c0_i32 = arith.constant 0 : i32
    %c0_i32_0 = arith.constant 0 : i32
    return %arg0, %c0_i32 : i32, i32
  }
  func.func @transform_1(%arg0: i32, %arg1: i32) -> (i32, i32) {
    %c0_i32 = arith.constant 0 : i32
    %c0_i32_0 = arith.constant 0 : i32
    %c0_i32_1 = arith.constant 0 : i32
    return %c0_i32, %c0_i32_0 : i32, i32
  }
  func.func @transform_2(%arg0: i32, %arg1: i32) -> (i32, i32, i32) {
    %c0_i32 = arith.constant 0 : i32
    %c0_i32_0 = arith.constant 0 : i32
    return %arg1, %arg0, %c0_i32 : i32, i32, i32
  }
  func.func @transform_3(%arg0: i32, %arg1: i32) -> (i32, i32, i32) {
    %c0_i32 = arith.constant 0 : i32
    %c0_i32_0 = arith.constant 0 : i32
    return %arg1, %arg0, %c0_i32 : i32, i32, i32
  }
}

</mosaic_0001>

<llo_original>
// kernel: tpu_custom_call.1
$region0: #{tpu_custom_call.1}
  #allocation0 [shape = 'u32[]', space=smem, size = 0x4, offset = 0x4, fixed_abs, tag = 'smem constant byte address 0x4 - core index']
  #allocation1 [shape = 'u32[144,128]{1,0:T(1,128)}', space=vmem, size = 0x12000, scoped, tag = 'internal scratch']
  %s0 = inlined_call_operand.vmem [shape: f32[8,32], index: 0, kind: input, shape index: {}]
  %s1 = inlined_call_operand.vmem [shape: f32[1,32], index: 1, kind: input, shape index: {}]
  %s2 = inlined_call_operand.vmem [shape: f32[2,8,1], index: 2, kind: input, shape index: {}]
  %s3 = inlined_call_operand.hbm [shape: f32[2,8,32], index: 3, kind: output, shape index: {}]
  %s4 = sld [smem:[#allocation0]]
  $region45: #{tpu_custom_call.1} parent=0
    _
  %s6 = ssub.s32 1, %s4
  %s7 = scalar_select 0, %s6, %s4
  $region1: #{tpu_custom_call.1} parent=0
    #allocation2 [shape = 'u8[8192]{0}', space=vmem, size = 0x2000, scoped, tag = 'output window, operand 0']
    #allocation3 [shape = 's32[2]{0}', space=sflag, size = 0x8, scoped, tag = 'scoped memory for tpu_custom_call.1']
    %8 = vsyncpa [#allocation3], 0
    %s9 = scalar_lea.sflag [#allocation3], 1
    %10 = vsyncpa %s9, 0
    loop: start=0, step=1, limit=4
    $region2: #{tpu_custom_call.1} parent=1 // loop_pre_header
      _
    $region3: #{tpu_custom_call.1} parent=1 // loop_header
      %s12 = sphi 0, %s16
      %p13 = scmp.ge.s32.totalorder %s12, 4
      %s19 = sphi 0, %s31
      %s20 = sphi 0, %s27
      %s21 = sphi 0, %s19
      %s22 = sphi 0, %s20
      %s23 = sphi 0, %s21
      %s24 = sphi 0, %s22
      %s34 = sphi 0, %s36
      %s37 = sphi 0, %s34
      %s38 = sphi 0, %s37
      %s54 = sphi 0, %s38
      %s58 = sphi 0, %s58
      %s60 = sphi 0, %s58
      %s61 = sphi 0, %s60
      %s75 = sphi 0, %s61
      %s83 = sphi 0, %s85
      %s86 = sphi 0, %s83
      %s87 = sphi 0, %s86
      %s103 = sphi 0, %s87
      %s111 = sphi 0, %s113
      %s114 = sphi 0, %s111
      %s115 = sphi 0, %s114
      %s131 = sphi 0, %s115
    $region4: #{tpu_custom_call.1} parent=1 // loop_header_branch
      %15 = sbr.rel (%p13) target = $region8
    $region5: #{tpu_custom_call.1} parent=1 // loop_body
      %s17 = ssub.s32 %s12, 1
      %s18 = ssub.s32 %s12, 2
      %s25 = sadd.s32 1, %s20
      %p26 = scmp.ge.s32.totalorder %s25, 2
      %s27 = scalar_select %p26, 0, %s25
      %s28 = sadd.s32 1, %s19
      %s29 = scalar_select %p26, %s28, %s19
      %p30 = scmp.ge.s32.totalorder %s29, 1
      %s31 = scalar_select %p30, 0, %s29
      %s32 = ssub.s32 %s19, %s31
      %p33 = scmp.eq.s32.totalorder %s32, 0
      %s35 = sadd.s32 %s34, 1
      %s36 = scalar_select %p33, %s34, %s35
      %p39 = pneg %p33
      %p40 = scmp.eq.s32.totalorder %s12, 1
      %p41 = por %p39, %p40
      %p42 = scmp.ne.s32.totalorder %s34, %s37
      %p43 = scmp.eq.s32.totalorder %s12, 0
      %p44 = por %p42, %p43
      %p45 = scmp.ne.s32.totalorder %s34, %s37
      %p46 = scmp.eq.s32.totalorder %s17, 1
      %p47 = por %p45, %p46
      %p48 = scmp.ne.s32.totalorder %s37, %s38
      %p49 = scmp.eq.s32.totalorder %s17, 0
      %p50 = por %p48, %p49
      %p51 = scmp.ne.s32.totalorder %s37, %s38
      %p52 = scmp.eq.s32.totalorder %s18, 1
      %p53 = por %p51, %p52
      %p55 = scmp.ne.s32.totalorder %s38, %s54
      %p56 = scmp.eq.s32.totalorder %s18, 0
      %p57 = por %p55, %p56
      %s59 = sadd.s32 %s58, 1
      %p62 = scmp.eq.s32.totalorder %s12, 1
      %p63 = scmp.ne.s32.totalorder %s58, %s60
      %p64 = scmp.eq.s32.totalorder %s12, 0
      %p65 = por %p63, %p64
      %p66 = scmp.ne.s32.totalorder %s58, %s60
      %p67 = scmp.eq.s32.totalorder %s17, 1
      %p68 = por %p66, %p67
      %p69 = scmp.ne.s32.totalorder %s60, %s61
      %p70 = scmp.eq.s32.totalorder %s17, 0
      %p71 = por %p69, %p70
      %p72 = scmp.ne.s32.totalorder %s60, %s61
      %p73 = scmp.eq.s32.totalorder %s18, 1
      %p74 = por %p72, %p73
      %p76 = scmp.ne.s32.totalorder %s61, %s75
      %p77 = scmp.eq.s32.totalorder %s18, 0
      %p78 = por %p76, %p77
      %s79 = ssub.s32 %s20, %s27
      %s80 = ssub.s32 %s19, %s31
      %s81 = sor.u32 %s79, %s80
      %p82 = scmp.eq.s32.totalorder %s81, 0
      %s84 = sadd.s32 %s83, 1
      %s85 = scalar_select %p82, %s83, %s84
      %p88 = pneg %p82
      %p89 = scmp.eq.s32.totalorder %s12, 1
      %p90 = por %p88, %p89
      %p91 = scmp.ne.s32.totalorder %s83, %s86
      %p92 = scmp.eq.s32.totalorder %s12, 0
      %p93 = por %p91, %p92
      %p94 = scmp.ne.s32.totalorder %s83, %s86
      %p95 = scmp.eq.s32.totalorder %s17, 1
      %p96 = por %p94, %p95
      %p97 = scmp.ne.s32.totalorder %s86, %s87
      %p98 = scmp.eq.s32.totalorder %s17, 0
      %p99 = por %p97, %p98
      %p100 = scmp.ne.s32.totalorder %s86, %s87
      %p101 = scmp.eq.s32.totalorder %s18, 1
      %p102 = por %p100, %p101
      %p104 = scmp.ne.s32.totalorder %s87, %s103
      %p105 = scmp.eq.s32.totalorder %s18, 0
      %p106 = por %p104, %p105
      %s107 = ssub.s32 %s20, %s27
      %s108 = ssub.s32 %s19, %s31
      %s109 = sor.u32 %s107, %s108
      %p110 = scmp.eq.s32.totalorder %s109, 0
      %s112 = sadd.s32 %s111, 1
      %s113 = scalar_select %p110, %s111, %s112
      %p116 = pneg %p110
      %p117 = scmp.eq.s32.totalorder %s12, 1
      %p118 = por %p116, %p117
      %p119 = scmp.ne.s32.totalorder %s111, %s114
      %p120 = scmp.eq.s32.totalorder %s12, 0
      %p121 = por %p119, %p120
      %p122 = scmp.ne.s32.totalorder %s111, %s114
      %p123 = scmp.eq.s32.totalorder %s17, 1
      %p124 = por %p122, %p123
      %p125 = scmp.ne.s32.totalorder %s114, %s115
      %p126 = scmp.eq.s32.totalorder %s17, 0
      %p127 = por %p125, %p126
      %p128 = scmp.ne.s32.totalorder %s114, %s115
      %p129 = scmp.eq.s32.totalorder %s18, 1
      %p130 = por %p128, %p129
      %p132 = scmp.ne.s32.totalorder %s115, %s131
      %p133 = scmp.eq.s32.totalorder %s18, 0
      %p134 = por %p132, %p133
      %p135 = scmp.le.s32.totalorder 1, %s12
      %p136 = scmp.lt.s32.totalorder %s12, 3
      %p137 = pnand %p135, %p136
      %p138 = pneg %p137
      // Predicated region
      $region9: #{tpu_custom_call.1} parent=5 // pred_check
        _
      $region10: #{tpu_custom_call.1} parent=5 // pred_check_branch
        %140 = sbr.rel (%p137) target = $region12
      $region11: #{tpu_custom_call.1} parent=5 // pred_region
        %s141 = ssub.s32 %s12, 1
        // Predicated region
        $region13: #{tpu_custom_call.1} parent=11 // pred_check
          %p142 = pneg %p50
        $region14: #{tpu_custom_call.1} parent=11 // pred_check_branch
          %144 = sbr.rel (%p142) target = $region16
        $region15: #{tpu_custom_call.1} parent=11 // pred_region
          %p145 = scmp.lt.s32.totalorder %s21, 0
          %s146 = scalar_select %p145, %s21, 0
          %s147 = smul.addr %s146, 8
          %s148 = scalar_lea.vmem %s0, %s147
        $region16: #{tpu_custom_call.1} parent=11 // pred_fallthru
          _
        // Predicated region
        $region17: #{tpu_custom_call.1} parent=11 // pred_check
          %p149 = pneg %p71
        $region18: #{tpu_custom_call.1} parent=11 // pred_check_branch
          %151 = sbr.rel (%p149) target = $region20
        $region19: #{tpu_custom_call.1} parent=11 // pred_region
          _
        $region20: #{tpu_custom_call.1} parent=11 // pred_fallthru
          _
      $region12: #{tpu_custom_call.1} parent=5 // pred_fallthru
        _
      %p152 = scmp.lt.s32.totalorder %s12, 2
      // Predicated region
      $region21: #{tpu_custom_call.1} parent=5 // pred_check
        %p153 = pneg %p152
      $region22: #{tpu_custom_call.1} parent=5 // pred_check_branch
        %155 = sbr.rel (%p153) target = $region24
      $region23: #{tpu_custom_call.1} parent=5 // pred_region
        // Predicated region
        $region25: #{tpu_custom_call.1} parent=23 // pred_check
          %p156 = pneg %p93
        $region26: #{tpu_custom_call.1} parent=23 // pred_check_branch
          %158 = sbr.rel (%p156) target = $region28
        $region27: #{tpu_custom_call.1} parent=23 // pred_region
          %p159 = scmp.lt.s32.totalorder %s20, 1
          %s160 = scalar_select %p159, %s20, 1
          %p161 = scmp.lt.s32.totalorder %s19, 0
          %s162 = scalar_select %p161, %s19, 0
          %s163 = sadd.s32 %s162, %s160
          %s164 = smul.addr %s163, 8
          %s165 = scalar_lea.vmem %s2, %s164
        $region28: #{tpu_custom_call.1} parent=23 // pred_fallthru
          _
      $region24: #{tpu_custom_call.1} parent=5 // pred_fallthru
        _
      %p166 = scmp.le.s32.totalorder 1, %s12
      %p167 = scmp.lt.s32.totalorder %s12, 3
      %p168 = pnand %p166, %p167
      %p169 = pneg %p168
      // Predicated region
      $region29: #{tpu_custom_call.1} parent=5 // pred_check
        _
      $region30: #{tpu_custom_call.1} parent=5 // pred_check_branch
        %171 = sbr.rel (%p168) target = $region32
      $region31: #{tpu_custom_call.1} parent=5 // pred_region
        %s172 = ssub.s32 %s12, 1
        %p173 = scmp.lt.s32.totalorder %s21, 0
        %s174 = scalar_select %p173, %s21, 0
        %s175 = smul.addr %s174, 8
        %s176 = scalar_lea.vmem %s0, %s175
        %p177 = pneg %p50
        %p178 = pneg %p47
        %p179 = pneg %p71
        %p180 = pneg %p68
        %p181 = scmp.lt.s32.totalorder %s22, 1
        %s182 = scalar_select %p181, %s22, 1
        %p183 = scmp.lt.s32.totalorder %s21, 0
        %s184 = scalar_select %p183, %s21, 0
        %s185 = sadd.s32 %s184, %s182
        %s186 = smul.addr %s185, 8
        %s187 = scalar_lea.vmem %s2, %s186
        %p188 = pneg %p99
        %p189 = pneg %p96
        %p190 = pneg %p127
        %p191 = pneg %p124
        %s192 = sand.u32 %s114, 1
        %s193 = scalar_lea.sflag [#allocation3], %s192
        %s194 = sand.u32 %s114, 1
        %s195 = smul.addr %s194, 8
        %s196 = scalar_lea.vmem [#allocation2], %s195
        %p197 = scmp.lt.s32.totalorder %s21, 0
        %s198 = scalar_select %p197, %s21, 0
        %s199 = smul.addr %s198, 8
        %s200 = scalar_lea.vmem %s0, %s199
        %p201 = scmp.lt.s32.totalorder %s22, 1
        %s202 = scalar_select %p201, %s22, 1
        %p203 = scmp.lt.s32.totalorder %s21, 0
        %s204 = scalar_select %p203, %s21, 0
        %s205 = sadd.s32 %s204, %s202
        %s206 = smul.addr %s205, 8
        %s207 = scalar_lea.vmem %s2, %s206
        %v208 = vld [vmem:[%s207] sm:$0xff]
        %v209 = vld [vmem:[%s1] sm:$0x1]
        %211 = vset.pattern.permute.xlu0 0
        %212 = vperm.xlu0 %211, %v208
        %v213 = vpop.permute.xlu0 %212
        %v216 = vlaneseq
        %v217 = vshrl.u32 %v216, 7
        %v218 = vsub.s32 0, %v217
        %v219 = vrot.slane %v209, %v218
        %v221 = vmul.f32 %v213, %v219
        %v222 = vld [vmem:[%s200] sm:$0xff]
        %v223 = vadd.f32 %v222, %v221
        %v224 = vand.u32 2147483647, %v223
        %vm225 = vcmp.le.f32.partialorder %v224, 0.7853982
        %vm226 = vcmp.lt.s32.totalorder %v223, 0
        %v227 = vand.u32 %v223, 2139095040
        %v228 = vshrl.u32 %v227, 23
        %v229 = vsub.s32 %v228, 127
        %v230 = vand.u32 2147483647, %v223
        %v231 = vand.u32 %v230, 8388607
        %v232 = vor.u32 %v231, 8388608
        %v233 = vsub.s32 0, %v232
        %v234 = vadd.s32 %v229, 1
        %vm235 = vcmp.gt.s32.totalorder %v234, 0
        %v236 = vsel %vm235, %v234, 0
        %v237 = vshrl.u32 %v236, 5
        %v238 = vand.u32 %v236, 31
        %v239 = vsub.s32 32, %v238
        %v240 = vshrl.u32 683565275, %v239
        %v241 = vshll.u32 683565275, %v238
        %v242 = vshrl.u32 2475754826, %v239
        %v243 = vor.u32 %v241, %v242
        %v244 = vshll.u32 2475754826, %v238
        %v245 = vshrl.u32 2131351028, %v239
        %v246 = vor.u32 %v244, %v245
        %v247 = vshll.u32 2131351028, %v238
        %v248 = vshrl.u32 2102212464, %v239
        %v249 = vor.u32 %v247, %v248
        %v250 = vshll.u32 2102212464, %v238
        %v251 = vshrl.u32 920167782, %v239
        %v252 = vor.u32 %v250, %v251
        %v253 = vshll.u32 920167782, %v238
        %v254 = vshrl.u32 1326507024, %v239
        %v255 = vor.u32 %v253, %v254
        %vm256 = vcmp.lt.s32.totalorder %v237, 1
        %vm257 = vcmp.lt.s32.totalorder %v237, 2
        %vm258 = vcmp.lt.s32.totalorder %v237, 3
        %vm259 = vcmp.lt.s32.totalorder %v237, 4
        %v260 = vsel %vm256, %v240, %v243
        %v261 = vsel %vm259, %v249, 2102212464
        %v262 = vsel %vm258, %v246, %v261
        %v263 = vsel %vm257, %v260, %v262
        %v264 = vsel %vm256, %v243, %v246
        %v265 = vsel %vm259, %v252, 920167782
        %v266 = vsel %vm258, %v249, %v265
        %v267 = vsel %vm257, %v264, %v266
        %v268 = vsel %vm256, %v246, %v249
        %v269 = vsel %vm259, %v255, 1326507024
        %v270 = vsel %vm258, %v252, %v269
        %v271 = vsel %vm257, %v268, %v270
        %v272 = vshll.u32 %v232, 8
        %v273 = vmul.u32.u64.compose %v272, %v271
        %v274 = vextract.low.u32 %v273
        %v275 = vextract.high.u32 %v273
        %v276 = vmul.u32.u64.compose %v272, %v267
        %v277 = vextract.low.u32 %v276
        %v278 = vextract.high.u32 %v276
        %v279 = vmul.u32 %v272, %v263
        %v280 = vadd.s32 %v275, %v277
        %vm281 = vc.u32 %v275, %v277
        %v282 = vadd.s32 %v278, 1
        %v283 = vsel %vm281, %v282, %v278
        %v284 = vadd.s32 %v279, %v283
        %v285 = vadd.s32 %v284, 536870912
        %v286 = vshrl.u32 %v285, 30
        %v287 = vshll.u32 %v286, 30
        %v288 = vsub.s32 %v284, %v287
        %vm289 = vcmp.lt.s32.totalorder %v288, 0
        %v290 = vsub.s32 0, %v288
        %v291 = vsel %vm289, %v290, %v288
        %v292 = vclz %v291
        %v293 = vsub.s32 %v292, 2
        %vm294 = vcmp.gt.s32.totalorder 0, %v293
        %v295 = vsel %vm294, 0, %v293
        %v296 = vsub.s32 32, %v295
        %v297 = vshll.u32 %v288, %v295
        %v298 = vshrl.u32 %v280, %v296
        %v299 = vor.u32 %v297, %v298
        %v300 = vsub.s32 4294967266, %v295
        %v301 = vadd.s32 %v300, 127
        %v302 = vshll.u32 %v301, 23
        %v303 = vor.u32 4788187, %v302
        %v304 = vand.u32 2147483647, %v303
        %v306 = vcvt.s32.f32 %v299
        %v307 = vmul.f32 %v306, %v304
        %v308 = vxor.u32 %v307, 2147483648
        %v309 = vsel %vm226, %v308, %v307
        %v310 = vsub.s32 4, %v286
        %v311 = vsel %vm226, %v310, %v286
        %v312 = vsel %vm225, %v223, %v309
        %v313 = vsel %vm225, 0, %v311
        %v314 = vcosq.f32.pop %v312
        %v315 = vsinq.f32.pop %v312
        %vm316 = vweird.f32 %v223
        %v317 = vadd.s32 %v313, 3
        %v318 = vand.u32 %v317, 3
        %vm319 = vcmp.lt.s32.totalorder %v318, 2
        %vm320 = vcmp.eq.s32.totalorder %v318, 0
        %v321 = vxor.u32 %v315, 2147483648
        %v322 = vsel %vm320, %v314, %v321
        %vm323 = vcmp.eq.s32.totalorder %v318, 2
        %v324 = vxor.u32 %v314, 2147483648
        %v325 = vsel %vm323, %v324, %v315
        %v326 = vsel %vm319, %v322, %v325
        %v327 = vsel %vm316, nan, %v326
        %vm328 = vcmask 261120
        %329 = vst.msk [vmem:[%s196] sm:$0xff] %vm328, %v327
        %s330 = sand.u32 %s114, 1
        %s331 = scalar_lea.sflag [#allocation3], %s330
        %s332 = sand.u32 %s114, 1
        %s333 = smul.addr %s332, 8
        %s334 = scalar_lea.vmem [#allocation2], %s333
        // Predicated region
        $region33: #{tpu_custom_call.1} parent=31 // pred_check
          %p335 = pneg %p124
        $region34: #{tpu_custom_call.1} parent=31 // pred_check_branch
          %337 = sbr.rel (%p335) target = $region36
        $region35: #{tpu_custom_call.1} parent=31 // pred_region
          %s339 = ssub.s32 128, 128
          %340 = vsyncadd %s331, %s339
          %s341 = sadd.s32 %s21, %s22
          %s342 = smul.addr %s341, 128
          %s343 = scalar_lea.hbm %s3, %s342
          %s345 = sshll.u32 %s334, 4
          %s346 = int_to_ptr.vmem [resolvable:$true] %s345
          %348 = dma.vmem_to_hbm [thread:$0]  %s346, 128, %s343, %s331
        $region36: #{tpu_custom_call.1} parent=31 // pred_fallthru
          _
      $region32: #{tpu_custom_call.1} parent=5 // pred_fallthru
        _
      %p349 = scmp.le.s32.totalorder 2, %s12
      // Predicated region
      $region37: #{tpu_custom_call.1} parent=5 // pred_check
        %p350 = pneg %p349
      $region38: #{tpu_custom_call.1} parent=5 // pred_check_branch
        %352 = sbr.rel (%p350) target = $region40
      $region39: #{tpu_custom_call.1} parent=5 // pred_region
        %s353 = ssub.s32 %s12, 2
        // Predicated region
        $region41: #{tpu_custom_call.1} parent=39 // pred_check
          %p354 = pneg %p130
        $region42: #{tpu_custom_call.1} parent=39 // pred_check_branch
          %356 = sbr.rel (%p354) target = $region44
        $region43: #{tpu_custom_call.1} parent=39 // pred_region
          %s357 = sand.u32 %s115, 1
          %s358 = scalar_lea.sflag [#allocation3], %s357
          %s359 = sand.u32 %s115, 1
          %s360 = smul.addr %s359, 8
          %s361 = scalar_lea.vmem [#allocation2], %s360
          %362 = dma.done %s358, 128
        $region44: #{tpu_custom_call.1} parent=39 // pred_fallthru
          _
      $region40: #{tpu_custom_call.1} parent=5 // pred_fallthru
        _
    $region6: #{tpu_custom_call.1} parent=1 // loop_footer
      %s16 = sadd.s32 1, %s12
    $region7: #{tpu_custom_call.1} parent=1 // loop_footer_branch
      %11 = sbr.rel target = $region3
    $region8: #{tpu_custom_call.1} parent=1 // loop_exit
      _
    %363 = vsyncpa [#allocation3], 1
    %s364 = scalar_lea.sflag [#allocation3], 1
    %365 = vsyncpa %s364, 1

</llo_original>
